<compile_context>
chip_gen: v6e
topology: v6e:2x2x1
jax: 0.10.0
libtpu: 0.0.40
codegen_flags: <defaults>
</compile_context>

<pallas_src>
import jax
import jax.numpy as jnp
from jax.experimental import pallas as pl
from jax.experimental.pallas import tpu as pltpu


# ---------------------------------------------------------------------------
# Tile-size helper: largest tile <= target bytes that divides `full` and is
# either a multiple of `align` or the full extent.
# ---------------------------------------------------------------------------
def _choose_tile(full, bytes_per_unit, target_bytes, align, max_tile=None):
    cap = target_bytes // max(1, bytes_per_unit)
    if max_tile is not None:
        cap = min(cap, max_tile)
    cap = max(1, min(full, cap))
    for cand in range(cap, 0, -1):
        if full % cand == 0 and (cand % align == 0 or cand == full):
            return cand
    return full


# ---------------------------------------------------------------------------
# Kernel 1: adaLN modulation, tiled over output columns of the (H, 2H) weight.
#   shift = SiLU(vec) @ W[:, :H] + b[:, :H]
#   scale = SiLU(vec) @ W[:, H:] + b[:, H:]
# grid = (H // tC,) ; vec stays resident, weight/bias/output blocks walk columns.
# ---------------------------------------------------------------------------
def _adaln_kernel(vec_ref, ws_ref, wc_ref, bs_ref, bc_ref, shift_ref, scale_ref):
    v = vec_ref[...].astype(jnp.float32)            # (B, H)
    sv = v * jax.nn.sigmoid(v)                      # SiLU in f32
    sv = sv.astype(ws_ref.dtype)                    # MXU operands in weight dtype
    shift_ref[...] = (
        jnp.dot(sv, ws_ref[...], preferred_element_type=jnp.float32)
        + bs_ref[...].astype(jnp.float32)
    ).astype(shift_ref.dtype)
    scale_ref[...] = (
        jnp.dot(sv, wc_ref[...], preferred_element_type=jnp.float32)
        + bc_ref[...].astype(jnp.float32)
    ).astype(scale_ref.dtype)


# ---------------------------------------------------------------------------
# Kernel 2: LayerNorm -> modulate -> final Linear, tiled (batch, seq-tile).
#   x_ref: (tT, H)  (batch dim squeezed)   shift/scale: (1, H)
#   w_ref: (H, O_pad)  b_ref: (1, O_pad)   o_ref: (tT, O_pad)
# ---------------------------------------------------------------------------
def _last_layer_kernel(x_ref, shift_ref, scale_ref, w_ref, b_ref, o_ref):
    xf = x_ref[...].astype(jnp.float32)             # LN statistics in f32
    mean = jnp.mean(xf, axis=-1, keepdims=True)
    xc = xf - mean
    var = jnp.mean(xc * xc, axis=-1, keepdims=True)
    xn = xc * jax.lax.rsqrt(var + 1e-6)             # (tT, H), eps=1e-6, no affine

    shift = shift_ref[...].astype(jnp.float32)      # (1, H)
    scale = scale_ref[...].astype(jnp.float32)      # (1, H)
    mod = (1.0 + scale) * xn + shift                # (tT, H) f32

    # Final projection on the MXU in the weight dtype (bf16 path when weights bf16).
    mod = mod.astype(w_ref.dtype)
    out = jnp.dot(mod, w_ref[...], preferred_element_type=jnp.float32)  # (tT, O_pad)
    out = out + b_ref[...].astype(jnp.float32)
    o_ref[...] = out.astype(o_ref.dtype)


# ---------------------------------------------------------------------------
# Wrapper
# ---------------------------------------------------------------------------
def last_layer_forward(x, vec, params):
    """x: (B, T, H), vec: (B, H) -> (B, T, patch*patch*out_channels)."""
    B, T, H = x.shape
    w_mod = params["w_mod"]     # (H, 2H)  adaLN linear weight (pre-transposed)
    b_mod = params["b_mod"]     # (1, 2H)
    w_lin = params["w_lin"]     # (H, O)   final linear weight (pre-transposed)
    b_lin = params["b_lin"]     # (1, O)
    O = w_lin.shape[1]

    # Split modulation params once (shift = first H cols, scale = second H cols,
    # matching torch .chunk(2, dim=1)).
    w_shift, w_scale = w_mod[:, :H], w_mod[:, H:]
    b_shift, b_scale = b_mod[:, :H], b_mod[:, H:]

    # --- adaLN modulation kernel, tiled over output columns ---
    tC = _choose_tile(H, H * w_mod.dtype.itemsize, 2 << 20, 128)
    nC = H // tC
    shift, scale = pl.pallas_call(
        _adaln_kernel,
        out_shape=(jax.ShapeDtypeStruct((B, H), jnp.float32),
                   jax.ShapeDtypeStruct((B, H), jnp.float32)),
        grid=(nC,),
        in_specs=[
            pl.BlockSpec((B, H), lambda c: (0, 0)),     # vec, resident across grid
            pl.BlockSpec((H, tC), lambda c: (0, c)),    # w_shift column tile
            pl.BlockSpec((H, tC), lambda c: (0, c)),    # w_scale column tile
            pl.BlockSpec((1, tC), lambda c: (0, c)),    # b_shift
            pl.BlockSpec((1, tC), lambda c: (0, c)),    # b_scale
        ],
        out_specs=(pl.BlockSpec((B, tC), lambda c: (0, c)),
                   pl.BlockSpec((B, tC), lambda c: (0, c))),
        compiler_params=pltpu.CompilerParams(
            dimension_semantics=("parallel",)),
    )(vec, w_shift, w_scale, b_shift, b_scale)

    # --- lane-dense output: zero-pad O up to a multiple of 128 columns ---
    O_pad = -(-O // 128) * 128
    if O_pad != O:
        w_lin = jnp.pad(w_lin, ((0, 0), (0, O_pad - O)))
        b_lin = jnp.pad(b_lin, ((0, 0), (0, O_pad - O)))

    # --- main kernel: LN + modulation + final linear, tiled over (B, seq) ---
    tT = _choose_tile(T, H * x.dtype.itemsize, 4 << 20, 8, max_tile=1024)
    nT = T // tT
    out = pl.pallas_call(
        _last_layer_kernel,
        out_shape=jax.ShapeDtypeStruct((B, T, O_pad), x.dtype),
        grid=(B, nT),
        in_specs=[
            pl.BlockSpec((None, tT, H), lambda b, t: (b, t, 0)),   # x tile (batch squeezed)
            pl.BlockSpec((1, H), lambda b, t: (b, 0)),             # shift, constant in t
            pl.BlockSpec((1, H), lambda b, t: (b, 0)),             # scale, constant in t
            pl.BlockSpec((H, O_pad), lambda b, t: (0, 0)),         # w_lin, resident
            pl.BlockSpec((1, O_pad), lambda b, t: (0, 0)),         # b_lin, resident
        ],
        out_specs=pl.BlockSpec((None, tT, O_pad), lambda b, t: (b, t, 0)),
        compiler_params=pltpu.CompilerParams(
            dimension_semantics=("parallel", "parallel")),
    )(x, shift, scale, w_lin, b_lin)

    return out[..., :O] if O_pad != O else out


# ---------------------------------------------------------------------------
# Pure-JAX reference for verification
# ---------------------------------------------------------------------------
def last_layer_ref(x, vec, params):
    sv = vec * jax.nn.sigmoid(vec)
    mod = sv @ params["w_mod"] + params["b_mod"][0]
    H = x.shape[-1]
    shift, scale = mod[:, :H], mod[:, H:]
    mean = jnp.mean(x, axis=-1, keepdims=True)
    var = jnp.mean((x - mean) ** 2, axis=-1, keepdims=True)
    xn = (x - mean) / jnp.sqrt(var + 1e-6)
    y = (1 + scale[:, None, :]) * xn + shift[:, None, :]
    return y @ params["w_lin"] + params["b_lin"][0]


if __name__ == "__main__":
    # Small, module-consistent shapes.
    B, T = 2, 8
    hidden_size = 32
    patch_size = 2
    out_channels = 4
    O = patch_size * patch_size * out_channels   # 16

    key = jax.random.PRNGKey(0)
    k1, k2, k3, k4, k5, k6 = jax.random.split(key, 6)

    x = jax.random.normal(k1, (B, T, hidden_size), dtype=jnp.float32)
    vec = jax.random.normal(k2, (B, hidden_size), dtype=jnp.float32)

    # Deterministic synthetic parameters (stored pre-transposed: (in, out)).
    params = {
        "w_mod": 0.05 * jax.random.normal(k3, (hidden_size, 2 * hidden_size), jnp.float32),
        "b_mod": 0.01 * jax.random.normal(k4, (1, 2 * hidden_size), jnp.float32),
        "w_lin": 0.05 * jax.random.normal(k5, (hidden_size, O), jnp.float32),
        "b_lin": 0.01 * jax.random.normal(k6, (1, O), jnp.float32),
    }

    out = last_layer_forward(x, vec, params)
    out = jax.block_until_ready(out)

    ref = last_layer_ref(x, vec, params)
    assert out.shape == (B, T, O)
    assert jnp.allclose(out, ref, atol=1e-4, rtol=1e-4), "mismatch vs reference"

    print("KERNEL_OK")
</pallas_src>

<mosaic_0001>
module attributes {stable_mosaic.version = 11 : i64} {
  func.func @_adaln_kernel(%arg0: i32, %arg1: memref<2x32xf32, #tpu.memory_space<vmem>>, %arg2: memref<32x32xf32, #tpu.memory_space<vmem>>, %arg3: memref<32x32xf32, #tpu.memory_space<vmem>>, %arg4: memref<1x32xf32, #tpu.memory_space<vmem>>, %arg5: memref<1x32xf32, #tpu.memory_space<vmem>>, %arg6: memref<2x32xf32, #tpu.memory_space<vmem>>, %arg7: memref<2x32xf32, #tpu.memory_space<vmem>>) attributes {dimension_semantics = [#tpu.dimension_semantics<parallel>], iteration_bounds = array<i64: 1>, scalar_prefetch = 0 : i64, scratch_operands = 0 : i64, tpu.core_type = #tpu.core_type<tc>, window_params = [{pipeline_mode = #tpu.pipeline_mode<synchronous>, transform_indices = @transform_0, window_bounds = array<i64: 2, 32>}, {transform_indices = @transform_1, window_bounds = array<i64: 32, 32>}, {transform_indices = @transform_2, window_bounds = array<i64: 32, 32>}, {transform_indices = @transform_3, window_bounds = array<i64: 1, 32>}, {transform_indices = @transform_4, window_bounds = array<i64: 1, 32>}, {transform_indices = @transform_5, window_bounds = array<i64: 2, 32>}, {transform_indices = @transform_6, window_bounds = array<i64: 2, 32>}]} {
    %c0 = arith.constant 0 : index
    %c0_0 = arith.constant 0 : index
    %0 = vector.load %arg1[%c0, %c0_0] : memref<2x32xf32, #tpu.memory_space<vmem>>, vector<2x32xf32>
    %1 = arith.negf %0 : vector<2x32xf32>
    %2 = math.exp %1 : vector<2x32xf32>
    %cst = arith.constant 1.000000e+00 : f32
    %3 = vector.broadcast %cst : f32 to vector<2x32xf32>
    %4 = arith.addf %3, %2 : vector<2x32xf32>
    %5 = arith.divf %3, %4 : vector<2x32xf32>
    %6 = arith.mulf %0, %5 : vector<2x32xf32>
    %c0_1 = arith.constant 0 : index
    %c0_2 = arith.constant 0 : index
    %7 = vector.load %arg2[%c0_1, %c0_2] : memref<32x32xf32, #tpu.memory_space<vmem>>, vector<32x32xf32>
    %cst_3 = arith.constant dense<0.000000e+00> : vector<2x32xf32>
    %8 = tpu.matmul %6, %7, %cst_3 {dimension_numbers = #tpu.dot_dimension_numbers<[1], [0], [0], [1], [0, 0, 1, 1], [], []>} : vector<2x32xf32>, vector<32x32xf32>, vector<2x32xf32> -> vector<2x32xf32>
    %c0_4 = arith.constant 0 : index
    %c0_5 = arith.constant 0 : index
    %9 = vector.load %arg4[%c0_4, %c0_5] : memref<1x32xf32, #tpu.memory_space<vmem>>, vector<1x32xf32>
    %10 = vector.broadcast %9 : vector<1x32xf32> to vector<2x32xf32>
    %11 = arith.addf %8, %10 : vector<2x32xf32>
    %c0_6 = arith.constant 0 : index
    %c0_7 = arith.constant 0 : index
    %12 = vector.load %arg6[%c0_6, %c0_7] : memref<2x32xf32, #tpu.memory_space<vmem>>, vector<2x32xf32>
    tpu.vector_store %arg6[%c0_6, %c0_7], %11 {strides = array<i32>} : memref<2x32xf32, #tpu.memory_space<vmem>>, vector<2x32xf32>,
    %c0_8 = arith.constant 0 : index
    %c0_9 = arith.constant 0 : index
    %13 = vector.load %arg3[%c0_8, %c0_9] : memref<32x32xf32, #tpu.memory_space<vmem>>, vector<32x32xf32>
    %cst_10 = arith.constant dense<0.000000e+00> : vector<2x32xf32>
    %14 = tpu.matmul %6, %13, %cst_10 {dimension_numbers = #tpu.dot_dimension_numbers<[1], [0], [0], [1], [0, 0, 1, 1], [], []>} : vector<2x32xf32>, vector<32x32xf32>, vector<2x32xf32> -> vector<2x32xf32>
    %c0_11 = arith.constant 0 : index
    %c0_12 = arith.constant 0 : index
    %15 = vector.load %arg5[%c0_11, %c0_12] : memref<1x32xf32, #tpu.memory_space<vmem>>, vector<1x32xf32>
    %16 = vector.broadcast %15 : vector<1x32xf32> to vector<2x32xf32>
    %17 = arith.addf %14, %16 : vector<2x32xf32>
    %c0_13 = arith.constant 0 : index
    %c0_14 = arith.constant 0 : index
    %18 = vector.load %arg7[%c0_13, %c0_14] : memref<2x32xf32, #tpu.memory_space<vmem>>, vector<2x32xf32>
    tpu.vector_store %arg7[%c0_13, %c0_14], %17 {strides = array<i32>} : memref<2x32xf32, #tpu.memory_space<vmem>>, vector<2x32xf32>,
    return
  }
  func.func @transform_0(%arg0: i32) -> (i32, i32) {
    %c0_i32 = arith.constant 0 : i32
    %c0_i32_0 = arith.constant 0 : i32
    %c0_i32_1 = arith.constant 0 : i32
    return %c0_i32, %c0_i32_0 : i32, i32
  }
  func.func @transform_1(%arg0: i32) -> (i32, i32) {
    %c0_i32 = arith.constant 0 : i32
    %c0_i32_0 = arith.constant 0 : i32
    return %c0_i32, %arg0 : i32, i32
  }
  func.func @transform_2(%arg0: i32) -> (i32, i32) {
    %c0_i32 = arith.constant 0 : i32
    %c0_i32_0 = arith.constant 0 : i32
    return %c0_i32, %arg0 : i32, i32
  }
  func.func @transform_3(%arg0: i32) -> (i32, i32) {
    %c0_i32 = arith.constant 0 : i32
    %c0_i32_0 = arith.constant 0 : i32
    return %c0_i32, %arg0 : i32, i32
  }
  func.func @transform_4(%arg0: i32) -> (i32, i32) {
    %c0_i32 = arith.constant 0 : i32
    %c0_i32_0 = arith.constant 0 : i32
    return %c0_i32, %arg0 : i32, i32
  }
  func.func @transform_5(%arg0: i32) -> (i32, i32) {
    %c0_i32 = arith.constant 0 : i32
    %c0_i32_0 = arith.constant 0 : i32
    return %c0_i32, %arg0 : i32, i32
  }
  func.func @transform_6(%arg0: i32) -> (i32, i32) {
    %c0_i32 = arith.constant 0 : i32
    %c0_i32_0 = arith.constant 0 : i32
    return %c0_i32, %arg0 : i32, i32
  }
}

</mosaic_0001>

<llo_original>
// kernel: tpu_custom_call.1
$region0: #{tpu_custom_call.1}
  #allocation0 [shape = 'u32[]', space=smem, size = 0x4, offset = 0x4, fixed_abs, tag = 'smem constant byte address 0x4 - core index']
  #allocation1 [shape = 'u32[144,128]{1,0:T(1,128)}', space=vmem, size = 0x12000, scoped, tag = 'internal scratch']
  %s0 = inlined_call_operand.hbm [shape: f32[2,32], index: 0, kind: input, shape index: {}]
  %s1 = inlined_call_operand.hbm [shape: f32[32,32], index: 1, kind: input, shape index: {}]
  %s2 = inlined_call_operand.hbm [shape: f32[32,32], index: 2, kind: input, shape index: {}]
  %s3 = inlined_call_operand.vmem [shape: f32[1,32], index: 3, kind: input, shape index: {}]
  %s4 = inlined_call_operand.vmem [shape: f32[1,32], index: 4, kind: input, shape index: {}]
  %s5 = inlined_call_operand.hbm [shape: f32[2,32], index: 5, kind: output, shape index: {0}]
  %s6 = inlined_call_operand.hbm [shape: f32[2,32], index: 6, kind: output, shape index: {1}]
  %7 = xla_tuple %s5, %s6
  %s8 = sld [smem:[#allocation0]]
  $region50: #{tpu_custom_call.1} parent=0
    _
  %s10 = ssub.s32 1, %s8
  %s11 = scalar_select 0, %s10, %s8
  $region1: #{tpu_custom_call.1} parent=0
    #allocation2 [shape = 'u8[1024]{0}', space=vmem, size = 0x400, scoped, tag = 'input window, operand 0, single buffered']
    #allocation3 [shape = 's32[1]{0}', space=sflag, size = 0x4, scoped, tag = 'scoped memory for tpu_custom_call.1']
    #allocation4 [shape = 's32[1]{0}', space=sflag, size = 0x4, scoped, tag = 'scoped memory for tpu_custom_call.1']
    #allocation5 [shape = 'u8[16384]{0}', space=vmem, size = 0x4000, scoped, tag = 'input window, operand 1, single buffered']
    #allocation6 [shape = 's32[1]{0}', space=sflag, size = 0x4, scoped, tag = 'scoped memory for tpu_custom_call.1']
    #allocation7 [shape = 'u8[16384]{0}', space=vmem, size = 0x4000, scoped, tag = 'input window, operand 2, single buffered']
    #allocation8 [shape = 'u8[1024]{0}', space=vmem, size = 0x400, scoped, tag = 'output window, operand 0, single buffered']
    #allocation9 [shape = 'u8[1024]{0}', space=vmem, size = 0x400, scoped, tag = 'output window, operand 1, single buffered']
    #allocation10 [shape = 's32[1]{0}', space=sflag, size = 0x4, scoped, tag = 'scoped memory for tpu_custom_call.1']
    %12 = vsyncpa [#allocation3], 0
    %13 = vsyncpa [#allocation6], 0
    %14 = vsyncpa [#allocation4], 0
    %15 = vsyncpa [#allocation10], 0
    // Predicated region
    $region2: #{tpu_custom_call.1} parent=1 // pred_check
      _
    $region3: #{tpu_custom_call.1} parent=1 // pred_check_branch
      %17 = sbr.rel (0) target = $region5
    $region4: #{tpu_custom_call.1} parent=1 // pred_region
      %s19 = ssub.s32 32, 32
      %20 = vsyncadd [#allocation3], %s19
      %s22 = sshll.u32 [#allocation2], 4
      %s23 = int_to_ptr.vmem [resolvable:$true] %s22
      %25 = dma.hbm_to_vmem [thread:$0]  %s0, 32, %s23, [#allocation3]
    $region5: #{tpu_custom_call.1} parent=1 // pred_fallthru
      _
    // Predicated region
    $region6: #{tpu_custom_call.1} parent=1 // pred_check
      _
    $region7: #{tpu_custom_call.1} parent=1 // pred_check_branch
      %27 = sbr.rel (0) target = $region9
    $region8: #{tpu_custom_call.1} parent=1 // pred_region
      %s29 = ssub.s32 512, 512
      %30 = vsyncadd [#allocation6], %s29
      %s31 = sshll.u32 [#allocation5], 4
      %s32 = int_to_ptr.vmem [resolvable:$true] %s31
      %37 = dma.hbm_to_vmem [thread:$0]  %s1, 512, %s32, [#allocation6], 128, 128, 8
    $region9: #{tpu_custom_call.1} parent=1 // pred_fallthru
      _
    // Predicated region
    $region10: #{tpu_custom_call.1} parent=1 // pred_check
      _
    $region11: #{tpu_custom_call.1} parent=1 // pred_check_branch
      %39 = sbr.rel (0) target = $region13
    $region12: #{tpu_custom_call.1} parent=1 // pred_region
      %s41 = ssub.s32 512, 512
      %42 = vsyncadd [#allocation6], %s41
      %s43 = sshll.u32 [#allocation7], 4
      %s44 = int_to_ptr.vmem [resolvable:$true] %s43
      %49 = dma.hbm_to_vmem [thread:$0]  %s2, 512, %s44, [#allocation6], 128, 128, 8
    $region13: #{tpu_custom_call.1} parent=1 // pred_fallthru
      _
    // Predicated region
    $region14: #{tpu_custom_call.1} parent=1 // pred_check
      _
    $region15: #{tpu_custom_call.1} parent=1 // pred_check_branch
      %51 = sbr.rel (0) target = $region17
    $region16: #{tpu_custom_call.1} parent=1 // pred_region
      _
    $region17: #{tpu_custom_call.1} parent=1 // pred_fallthru
      _
    // Predicated region
    $region18: #{tpu_custom_call.1} parent=1 // pred_check
      _
    $region19: #{tpu_custom_call.1} parent=1 // pred_check_branch
      %53 = sbr.rel (0) target = $region21
    $region20: #{tpu_custom_call.1} parent=1 // pred_region
      _
    $region21: #{tpu_custom_call.1} parent=1 // pred_fallthru
      _
    // Predicated region
    $region22: #{tpu_custom_call.1} parent=1 // pred_check
      _
    $region23: #{tpu_custom_call.1} parent=1 // pred_check_branch
      %55 = sbr.rel (0) target = $region25
    $region24: #{tpu_custom_call.1} parent=1 // pred_region
      %56 = dma.done [#allocation3], 32
    $region25: #{tpu_custom_call.1} parent=1 // pred_fallthru
      _
    // Predicated region
    $region26: #{tpu_custom_call.1} parent=1 // pred_check
      _
    $region27: #{tpu_custom_call.1} parent=1 // pred_check_branch
      %58 = sbr.rel (0) target = $region29
    $region28: #{tpu_custom_call.1} parent=1 // pred_region
      %59 = dma.done [#allocation6], 512
    $region29: #{tpu_custom_call.1} parent=1 // pred_fallthru
      _
    // Predicated region
    $region30: #{tpu_custom_call.1} parent=1 // pred_check
      _
    $region31: #{tpu_custom_call.1} parent=1 // pred_check_branch
      %61 = sbr.rel (0) target = $region33
    $region32: #{tpu_custom_call.1} parent=1 // pred_region
      %62 = dma.done [#allocation6], 512
    $region33: #{tpu_custom_call.1} parent=1 // pred_fallthru
      _
    %v63 = vld [vmem:[#allocation2] sm:$0x3]
    %v64 = vxor.u32 %v63, 2147483648
    %v65 = vmul.f32 %v64, 1.442695
    %v66 = vpow.pop %v65
    %v67 = vadd.f32 %v66, 1.0
    %v68 = vrcp.pop %v67
    %v69 = vmul.f32 1.0, %v68
    %v70 = vmul.f32 %v63, %v69
    %v71 = vld [vmem:[#allocation5] sm:$0xff]
    %v72 = vld [vmem:[#allocation5 + $0x8] sm:$0xff]
    %v73 = vld [vmem:[#allocation5 + $0x10] sm:$0xff]
    %v74 = vld [vmem:[#allocation5 + $0x18] sm:$0xff]
    %v75 = vld [vmem:[%s3] sm:$0x1]
    %v77 = vlaneseq
    %v78 = vshrl.u32 %v77, 7
    %v79 = vsub.s32 0, %v78
    %v80 = vrot.slane %v75, %v79
    %vm82 = vcmask 261120
    %v84 = vsel %vm82, %v70, 0
    %86 = vmatprep.subr.mxu0 0.0
    %87 = vmatpush1.msra.mxu0 0.0
    %88 = vmatprep.subr.mxu0 0.0
    %89 = vmatpush1.msra.mxu0 0.0
    %90 = vmatprep.subr.mxu0 0.0
    %91 = vmatpush1.msra.mxu0 0.0
    %92 = vmatprep.subr.mxu0 0.0
    %93 = vmatpush1.msra.mxu0 0.0
    %94 = vmatprep.subr.mxu0 0.0
    %95 = vmatpush1.msra.mxu0 0.0
    %96 = vmatprep.subr.mxu0 0.0
    %97 = vmatpush1.msra.mxu0 0.0
    %98 = vmatprep.subr.mxu0 0.0
    %99 = vmatpush1.msra.mxu0 0.0
    %100 = vmatprep.subr.mxu0 0.0
    %101 = vmatpush1.msra.mxu0 0.0
    %102 = vmatprep.subr.mxu0 0.0
    %103 = vmatpush1.msra.mxu0 0.0
    %104 = vmatprep.subr.mxu0 0.0
    %105 = vmatpush1.msra.mxu0 0.0
    %106 = vmatprep.subr.mxu0 0.0
    %107 = vmatpush1.msra.mxu0 0.0
    %108 = vmatprep.subr.mxu0 0.0
    %109 = vmatpush1.msra.mxu0 0.0
    %110 = vmatprep.subr.mxu0 0.0
    %111 = vmatpush1.msra.mxu0 %v74
    %112 = vmatprep.subr.mxu0 0.0
    %113 = vmatpush1.msra.mxu0 %v73
    %114 = vmatprep.subr.mxu0 0.0
    %115 = vmatpush1.msra.mxu0 %v72
    %116 = vmatprep.subr.mxu0 0.0
    %117 = vmatpush1.msra.mxu0 %v71
    %118 = vmatprep.subr.mxu0 0.0
    %119 = vmatpush2.msra.mxu0 0.0
    %120 = vmatprep.subr.mxu0 0.0
    %121 = vmatpush2.msra.mxu0 0.0
    %122 = vmatprep.subr.mxu0 0.0
    %123 = vmatpush2.msra.mxu0 0.0
    %124 = vmatprep.subr.mxu0 0.0
    %125 = vmatpush2.msra.mxu0 0.0
    %126 = vmatprep.subr.mxu0 0.0
    %127 = vmatpush2.msra.mxu0 0.0
    %128 = vmatprep.subr.mxu0 0.0
    %129 = vmatpush2.msra.mxu0 0.0
    %130 = vmatprep.subr.mxu0 0.0
    %131 = vmatpush2.msra.mxu0 0.0
    %132 = vmatprep.subr.mxu0 0.0
    %133 = vmatpush2.msra.mxu0 0.0
    %134 = vmatprep.subr.mxu0 0.0
    %135 = vmatpush2.msra.mxu0 0.0
    %136 = vmatprep.subr.mxu0 0.0
    %137 = vmatpush2.msra.mxu0 0.0
    %138 = vmatprep.subr.mxu0 0.0
    %139 = vmatpush2.msra.mxu0 0.0
    %140 = vmatprep.subr.mxu0 0.0
    %141 = vmatpush2.msra.mxu0 0.0
    %142 = vmatprep.subr.mxu0 0.0
    %143 = vmatpush2.msra.mxu0 0.0
    %144 = vmatprep.subr.mxu0 0.0
    %145 = vmatpush2.msra.mxu0 0.0
    %146 = vmatprep.subr.mxu0 0.0
    %147 = vmatpush2.msra.mxu0 0.0
    %148 = vmatprep.subr.mxu0 0.0
    %149 = vmatpush2.msra.mxu0 0.0
    %150 = vmatprep.mubr.f32.mxu0 0.0
    %151 = vmatmul.mubr.f32.gmra.mxu0 %v84
    %v152 = vpop.f32.mrf.mxu0
    %v153 = vadd.f32 %v80, %v152
    %v154 = vpop.f32.mrf.mxu0
    %155 = vdwg.mxu0
    %vm156 = vcmask 254976
    %157 = vst.msk [vmem:[#allocation8] sm:$0x3] %vm156, %v153
    %v158 = vld [vmem:[#allocation7] sm:$0xff]
    %v159 = vld [vmem:[#allocation7 + $0x8] sm:$0xff]
    %v160 = vld [vmem:[#allocation7 + $0x10] sm:$0xff]
    %v161 = vld [vmem:[#allocation7 + $0x18] sm:$0xff]
    %v162 = vld [vmem:[%s4] sm:$0x1]
    %v164 = vlaneseq
    %v165 = vshrl.u32 %v164, 7
    %v166 = vsub.s32 0, %v165
    %v167 = vrot.slane %v162, %v166
    %169 = vmatprep.subr.mxu0 0.0
    %170 = vmatpush1.msra.mxu0 0.0
    %171 = vmatprep.subr.mxu0 0.0
    %172 = vmatpush1.msra.mxu0 0.0
    %173 = vmatprep.subr.mxu0 0.0
    %174 = vmatpush1.msra.mxu0 0.0
    %175 = vmatprep.subr.mxu0 0.0
    %176 = vmatpush1.msra.mxu0 0.0
    %177 = vmatprep.subr.mxu0 0.0
    %178 = vmatpush1.msra.mxu0 0.0
    %179 = vmatprep.subr.mxu0 0.0
    %180 = vmatpush1.msra.mxu0 0.0
    %181 = vmatprep.subr.mxu0 0.0
    %182 = vmatpush1.msra.mxu0 0.0
    %183 = vmatprep.subr.mxu0 0.0
    %184 = vmatpush1.msra.mxu0 0.0
    %185 = vmatprep.subr.mxu0 0.0
    %186 = vmatpush1.msra.mxu0 0.0
    %187 = vmatprep.subr.mxu0 0.0
    %188 = vmatpush1.msra.mxu0 0.0
    %189 = vmatprep.subr.mxu0 0.0
    %190 = vmatpush1.msra.mxu0 0.0
    %191 = vmatprep.subr.mxu0 0.0
    %192 = vmatpush1.msra.mxu0 0.0
    %193 = vmatprep.subr.mxu0 0.0
    %194 = vmatpush1.msra.mxu0 %v161
    %195 = vmatprep.subr.mxu0 0.0
    %196 = vmatpush1.msra.mxu0 %v160
    %197 = vmatprep.subr.mxu0 0.0
    %198 = vmatpush1.msra.mxu0 %v159
    %199 = vmatprep.subr.mxu0 0.0
    %200 = vmatpush1.msra.mxu0 %v158
    %201 = vmatprep.subr.mxu0 0.0
    %202 = vmatpush2.msra.mxu0 0.0
    %203 = vmatprep.subr.mxu0 0.0
    %204 = vmatpush2.msra.mxu0 0.0
    %205 = vmatprep.subr.mxu0 0.0
    %206 = vmatpush2.msra.mxu0 0.0
    %207 = vmatprep.subr.mxu0 0.0
    %208 = vmatpush2.msra.mxu0 0.0
    %209 = vmatprep.subr.mxu0 0.0
    %210 = vmatpush2.msra.mxu0 0.0
    %211 = vmatprep.subr.mxu0 0.0
    %212 = vmatpush2.msra.mxu0 0.0
    %213 = vmatprep.subr.mxu0 0.0
    %214 = vmatpush2.msra.mxu0 0.0
    %215 = vmatprep.subr.mxu0 0.0
    %216 = vmatpush2.msra.mxu0 0.0
    %217 = vmatprep.subr.mxu0 0.0
    %218 = vmatpush2.msra.mxu0 0.0
    %219 = vmatprep.subr.mxu0 0.0
    %220 = vmatpush2.msra.mxu0 0.0
    %221 = vmatprep.subr.mxu0 0.0
    %222 = vmatpush2.msra.mxu0 0.0
    %223 = vmatprep.subr.mxu0 0.0
    %224 = vmatpush2.msra.mxu0 0.0
    %225 = vmatprep.subr.mxu0 0.0
    %226 = vmatpush2.msra.mxu0 0.0
    %227 = vmatprep.subr.mxu0 0.0
    %228 = vmatpush2.msra.mxu0 0.0
    %229 = vmatprep.subr.mxu0 0.0
    %230 = vmatpush2.msra.mxu0 0.0
    %231 = vmatprep.subr.mxu0 0.0
    %232 = vmatpush2.msra.mxu0 0.0
    %233 = vmatprep.mubr.f32.mxu0 0.0
    %234 = vmatmul.mubr.f32.gmra.mxu0 %v84
    %v235 = vpop.f32.mrf.mxu0
    %v236 = vadd.f32 %v167, %v235
    %v237 = vpop.f32.mrf.mxu0
    %238 = vdwg.mxu0
    %239 = vst.msk [vmem:[#allocation9] sm:$0x3] %vm156, %v236
    // Predicated region
    $region34: #{tpu_custom_call.1} parent=1 // pred_check
      _
    $region35: #{tpu_custom_call.1} parent=1 // pred_check_branch
      %241 = sbr.rel (0) target = $region37
    $region36: #{tpu_custom_call.1} parent=1 // pred_region
      %s243 = ssub.s32 32, 32
      %244 = vsyncadd [#allocation4], %s243
      %s246 = sshll.u32 [#allocation8], 4
      %s247 = int_to_ptr.vmem [resolvable:$true] %s246
      %249 = dma.vmem_to_hbm [thread:$0]  %s247, 32, %s5, [#allocation4]
    $region37: #{tpu_custom_call.1} parent=1 // pred_fallthru
      _
    // Predicated region
    $region38: #{tpu_custom_call.1} parent=1 // pred_check
      _
    $region39: #{tpu_custom_call.1} parent=1 // pred_check_branch
      %251 = sbr.rel (0) target = $region41
    $region40: #{tpu_custom_call.1} parent=1 // pred_region
      %s253 = ssub.s32 32, 32
      %254 = vsyncadd [#allocation10], %s253
      %s256 = sshll.u32 [#allocation9], 4
      %s257 = int_to_ptr.vmem [resolvable:$true] %s256
      %259 = dma.vmem_to_hbm [thread:$0]  %s257, 32, %s6, [#allocation10]
    $region41: #{tpu_custom_call.1} parent=1 // pred_fallthru
      _
    // Predicated region
    $region42: #{tpu_custom_call.1} parent=1 // pred_check
      _
    $region43: #{tpu_custom_call.1} parent=1 // pred_check_branch
      %261 = sbr.rel (0) target = $region45
    $region44: #{tpu_custom_call.1} parent=1 // pred_region
      %262 = dma.done [#allocation4], 32
    $region45: #{tpu_custom_call.1} parent=1 // pred_fallthru
      _
    // Predicated region
    $region46: #{tpu_custom_call.1} parent=1 // pred_check
      _
    $region47: #{tpu_custom_call.1} parent=1 // pred_check_branch
      %264 = sbr.rel (0) target = $region49
    $region48: #{tpu_custom_call.1} parent=1 // pred_region
      %265 = dma.done [#allocation10], 32
    $region49: #{tpu_custom_call.1} parent=1 // pred_fallthru
      _
    %266 = vsyncpa [#allocation3], 1
    %267 = vsyncpa [#allocation6], 1
    %268 = vsyncpa [#allocation4], 1
    %269 = vsyncpa [#allocation10], 1

</llo_original>
